<compile_context>
chip_gen: v5e
topology: v5e:2x2
jax: 0.10.0
libtpu: 0.0.40
codegen_flags: <defaults>
</compile_context>

<pallas_src>
import functools

import jax
import jax.numpy as jnp
from jax import lax
from jax.experimental import pallas as pl
from jax.experimental.pallas import tpu as pltpu


def _ce_label_smooth_kernel(logits_ref, targets_ref, out_ref, *,
                            epsilon, num_classes, batch, tile_n,
                            size_average, mask_rows):
    x = logits_ref[...].astype(jnp.float32)                          # (tile_n, C)

    # Numerically stable log-sum-exp along the class (lane) axis.
    m = jnp.max(x, axis=1, keepdims=True)                            # (tile_n, 1)
    shifted = x - m
    lse = jnp.log(jnp.sum(jnp.exp(shifted), axis=1, keepdims=True))  # (tile_n, 1)

    # shifted[i, tgt_i] via iota-compare + masked sum (no gather on TPU).
    labels = targets_ref[...]                                        # (tile_n, 1) int32
    cls_idx = lax.broadcasted_iota(jnp.int32, shifted.shape, 1)
    tgt_shift = jnp.sum(jnp.where(cls_idx == labels, shifted, 0.0),
                        axis=1, keepdims=True)                       # (tile_n, 1)
    sum_shift = jnp.sum(shifted, axis=1, keepdims=True)              # (tile_n, 1)

    # Algebraic label-smoothed CE (sum_c t_c == 1 folds both lse terms).
    row_loss = (lse
                - (1.0 - epsilon) * tgt_shift
                - (epsilon / num_classes) * sum_shift)                # (tile_n, 1)

    if size_average:
        if mask_rows:
            # Zero padded / OOB rows of the partial final tile (static guard:
            # only compiled when N % tile_n != 0).
            i = pl.program_id(0)
            row_idx = i * tile_n + lax.broadcasted_iota(jnp.int32, row_loss.shape, 0)
            row_loss = jnp.where(row_idx < batch, row_loss, 0.0)
        # Lane-dense (1, 8, 128) partial block -> unmasked store; wrapper
        # reads [i, 0, 0].
        out_ref[...] = jnp.full(out_ref.shape, jnp.sum(row_loss), dtype=jnp.float32)
    else:
        # Per-row loss; Pallas clips the partial last tile at the output DMA.
        out_ref[...] = row_loss


def _pick_tile_n(n, c, itemsize):
    # Largest batch tile whose logits block is ~<= 8 MiB (double-buffered
    # pipeline then stays well under v7x's 32 MiB scoped VMEM), a multiple of
    # 8 sublanes, and no larger than the 8-padded batch.
    budget_bytes = 8 * 1024 * 1024
    t = budget_bytes // max(1, c * itemsize)
    t = max(8, min(1024, (t // 8) * 8))
    n_pad = ((n + 7) // 8) * 8
    return min(t, n_pad)


def cross_entropy_label_smooth(logits, targets, *, num_classes, epsilon=0.1,
                               size_average=True, tile_n=None):
    """logits: (N, C); targets: (N, 1) int class indices.

    Equivalent to CrossEntropyLabelSmooth(num_classes, epsilon,
    size_average=size_average)(logits, targets): scalar f32 if
    size_average=True, else per-sample (N,) f32 vector.
    """
    n, c = logits.shape
    assert c == num_classes
    targets = targets.astype(jnp.int32)
    itemsize = jnp.dtype(logits.dtype).itemsize

    if tile_n is None:
        tile_n = _pick_tile_n(n, c, itemsize)
    tile_n = max(8, (int(tile_n) // 8) * 8)
    num_tiles = pl.cdiv(n, tile_n)
    mask_rows = (n % tile_n) != 0

    kernel = functools.partial(
        _ce_label_smooth_kernel,
        epsilon=float(epsilon),
        num_classes=int(num_classes),
        batch=int(n),
        tile_n=int(tile_n),
        size_average=bool(size_average),
        mask_rows=bool(mask_rows),
    )

    if size_average:
        out_shape = jax.ShapeDtypeStruct((num_tiles, 8, 128), jnp.float32)
        out_spec = pl.BlockSpec((1, 8, 128), lambda i: (i, 0, 0))
        out_bytes = num_tiles * 8 * 128 * 4
    else:
        out_shape = jax.ShapeDtypeStruct((n, 1), jnp.float32)
        out_spec = pl.BlockSpec((tile_n, 1), lambda i: (i, 0))
        out_bytes = n * 4

    # Advisory costs so XLA can schedule/overlap the custom call.
    cost = pl.CostEstimate(
        flops=6 * n * c,
        transcendentals=n * c,
        bytes_accessed=n * c * itemsize + n * 4 + out_bytes,
    )

    block_bytes = tile_n * c * itemsize + tile_n * 4 + 8 * 128 * 4
    vmem_limit = int(min(32 * 1024 * 1024, max(4 * 1024 * 1024, 4 * block_bytes)))

    result = pl.pallas_call(
        kernel,
        out_shape=out_shape,
        grid=(num_tiles,),
        in_specs=[
            pl.BlockSpec((tile_n, c), lambda i: (i, 0)),   # logits tile (input dtype kept)
            pl.BlockSpec((tile_n, 1), lambda i: (i, 0)),   # targets tile
        ],
        out_specs=out_spec,
        compiler_params=pltpu.CompilerParams(
            dimension_semantics=("parallel",),
            vmem_limit_bytes=vmem_limit,
        ),
        cost_estimate=cost,
    )(logits, targets)

    if size_average:
        # (-t * log_probs).mean(0).sum() == (sum over all rows) / N.
        return result[:, 0, 0].sum() / n
    return result[:, 0]


def _reference(logits, targets, *, num_classes, epsilon=0.1, size_average=True):
    log_probs = jax.nn.log_softmax(logits.astype(jnp.float32), axis=1)
    one_hot = jax.nn.one_hot(targets[:, 0], num_classes, dtype=jnp.float32)
    t = (1.0 - epsilon) * one_hot + epsilon / num_classes
    if size_average:
        return jnp.sum(jnp.mean(-t * log_probs, axis=0))
    return jnp.sum(-t * log_probs, axis=1)


if __name__ == "__main__":
    num_classes = 128   # lane-dense class dim (multiple of 128)
    batch = 20          # not a multiple of the tile -> exercises row masking
    epsilon = 0.1

    key = jax.random.PRNGKey(0)
    k_logits, k_tgt = jax.random.split(key)
    logits = jax.random.normal(k_logits, (batch, num_classes), dtype=jnp.float32)
    targets = jax.random.randint(k_tgt, (batch, 1), 0, num_classes, dtype=jnp.int32)

    # size_average=True: multi-tile path (grid of 3, partial last tile) + auto tile.
    loss_tiled = cross_entropy_label_smooth(
        logits, targets, num_classes=num_classes, epsilon=epsilon, tile_n=8)
    loss_auto = cross_entropy_label_smooth(
        logits, targets, num_classes=num_classes, epsilon=epsilon)
    # size_average=False: per-sample loss vector.
    loss_vec = cross_entropy_label_smooth(
        logits, targets, num_classes=num_classes, epsilon=epsilon,
        size_average=False, tile_n=8)
    loss_tiled, loss_auto, loss_vec = jax.block_until_ready(
        (loss_tiled, loss_auto, loss_vec))

    ref_scalar = _reference(logits, targets, num_classes=num_classes, epsilon=epsilon)
    ref_vec = _reference(logits, targets, num_classes=num_classes, epsilon=epsilon,
                         size_average=False)
    assert jnp.allclose(loss_tiled, ref_scalar, atol=1e-5, rtol=1e-5), (loss_tiled, ref_scalar)
    assert jnp.allclose(loss_auto, ref_scalar, atol=1e-5, rtol=1e-5), (loss_auto, ref_scalar)
    assert jnp.allclose(loss_vec, ref_vec, atol=1e-5, rtol=1e-5), (loss_vec, ref_vec)

    print("KERNEL_OK")
</pallas_src>

<mosaic_0001>
module attributes {stable_mosaic.version = 11 : i64} {
  func.func @_ce_label_smooth_kernel(%arg0: i32, %arg1: memref<8x128xf32, #tpu.memory_space<vmem>>, %arg2: memref<8x1xi32, #tpu.memory_space<vmem>>, %arg3: memref<1x8x128xf32, #tpu.memory_space<vmem>>) attributes {dimension_semantics = [#tpu.dimension_semantics<parallel>], iteration_bounds = array<i64: 3>, scalar_prefetch = 0 : i64, scratch_operands = 0 : i64, tpu.core_type = #tpu.core_type<tc>, window_params = [{transform_indices = @transform_0, window_bounds = array<i64: 8, 128>}, {transform_indices = @transform_1, window_bounds = array<i64: 8, 1>}, {transform_indices = @transform_2, window_bounds = array<i64: 1, 8, 128>}]} {
    %c0 = arith.constant 0 : index
    %c0_0 = arith.constant 0 : index
    %0 = vector.load %arg1[%c0, %c0_0] : memref<8x128xf32, #tpu.memory_space<vmem>>, vector<8x128xf32>
    %cst = arith.constant dense<0xFF800000> : vector<8xf32>
    %1 = vector.multi_reduction <maximumf>, %0, %cst [1] : vector<8x128xf32> to vector<8xf32>
    %2 = vector.shape_cast %1 : vector<8xf32> to vector<8x1xf32>
    %3 = vector.broadcast %2 : vector<8x1xf32> to vector<8x128xf32>
    %4 = arith.subf %0, %3 : vector<8x128xf32>
    %5 = math.exp %4 : vector<8x128xf32>
    %cst_1 = arith.constant dense<0.000000e+00> : vector<8xf32>
    %6 = vector.multi_reduction <add>, %5, %cst_1 [1] : vector<8x128xf32> to vector<8xf32>
    %7 = vector.shape_cast %6 : vector<8xf32> to vector<8x1xf32>
    %8 = math.log %7 : vector<8x1xf32>
    %c0_2 = arith.constant 0 : index
    %c0_3 = arith.constant 0 : index
    %9 = vector.load %arg2[%c0_2, %c0_3] : memref<8x1xi32, #tpu.memory_space<vmem>>, vector<8x1xi32>
    %10 = tpu.iota {dimensions = array<i32: 1>} : vector<8x128xi32>
    %11 = vector.broadcast %9 : vector<8x1xi32> to vector<8x128xi32>
    %12 = arith.cmpi eq, %10, %11 : vector<8x128xi32>
    %cst_4 = arith.constant 0.000000e+00 : f32
    %13 = vector.broadcast %cst_4 : f32 to vector<8x128xf32>
    %14 = arith.select %12, %4, %13 : vector<8x128xi1>, vector<8x128xf32>
    %cst_5 = arith.constant dense<0.000000e+00> : vector<8xf32>
    %15 = vector.multi_reduction <add>, %14, %cst_5 [1] : vector<8x128xf32> to vector<8xf32>
    %16 = vector.shape_cast %15 : vector<8xf32> to vector<8x1xf32>
    %cst_6 = arith.constant dense<0.000000e+00> : vector<8xf32>
    %17 = vector.multi_reduction <add>, %4, %cst_6 [1] : vector<8x128xf32> to vector<8xf32>
    %18 = vector.shape_cast %17 : vector<8xf32> to vector<8x1xf32>
    %cst_7 = arith.constant 0.899999976 : f32
    %19 = vector.broadcast %cst_7 : f32 to vector<8x1xf32>
    %20 = arith.mulf %19, %16 : vector<8x1xf32>
    %21 = arith.subf %8, %20 : vector<8x1xf32>
    %cst_8 = arith.constant 7.812500e-04 : f32
    %22 = vector.broadcast %cst_8 : f32 to vector<8x1xf32>
    %23 = arith.mulf %22, %18 : vector<8x1xf32>
    %24 = arith.subf %21, %23 : vector<8x1xf32>
    %c8_i32 = arith.constant 8 : i32
    %25 = arith.muli %arg0, %c8_i32 : i32
    %26 = tpu.iota {dimensions = array<i32: 0>} : vector<8x1xi32>
    %27 = vector.broadcast %25 : i32 to vector<8x1xi32>
    %28 = arith.addi %27, %26 : vector<8x1xi32>
    %c20_i32 = arith.constant 20 : i32
    %29 = vector.broadcast %c20_i32 : i32 to vector<8x1xi32>
    %30 = arith.cmpi slt, %28, %29 : vector<8x1xi32>
    %cst_9 = arith.constant 0.000000e+00 : f32
    %31 = vector.broadcast %cst_9 : f32 to vector<8x1xf32>
    %32 = arith.select %30, %24, %31 : vector<8x1xi1>, vector<8x1xf32>
    %33 = vector.shape_cast %32 : vector<8x1xf32> to vector<1x8x1xf32>
    %cst_10 = arith.constant dense<0.000000e+00> : vector<1xf32>
    %34 = vector.multi_reduction <add>, %33, %cst_10 [1, 2] : vector<1x8x1xf32> to vector<1xf32>
    %35 = vector.shape_cast %34 : vector<1xf32> to vector<1x1x1xf32>
    %36 = vector.extract %35[0, 0, 0] : f32 from vector<1x1x1xf32>
    %37 = vector.broadcast %36 : f32 to vector<1x8x128xf32>
    %c0_11 = arith.constant 0 : index
    %c0_12 = arith.constant 0 : index
    %c0_13 = arith.constant 0 : index
    %38 = vector.load %arg3[%c0_11, %c0_12, %c0_13] : memref<1x8x128xf32, #tpu.memory_space<vmem>>, vector<1x8x128xf32>
    tpu.vector_store %arg3[%c0_11, %c0_12, %c0_13], %37 {strides = array<i32>} : memref<1x8x128xf32, #tpu.memory_space<vmem>>, vector<1x8x128xf32>,
    return
  }
  func.func @transform_0(%arg0: i32) -> (i32, i32) {
    %c0_i32 = arith.constant 0 : i32
    %c0_i32_0 = arith.constant 0 : i32
    return %arg0, %c0_i32 : i32, i32
  }
  func.func @transform_1(%arg0: i32) -> (i32, i32) {
    %c0_i32 = arith.constant 0 : i32
    %c0_i32_0 = arith.constant 0 : i32
    return %arg0, %c0_i32 : i32, i32
  }
  func.func @transform_2(%arg0: i32) -> (i32, i32, i32) {
    %c0_i32 = arith.constant 0 : i32
    %c0_i32_0 = arith.constant 0 : i32
    %c0_i32_1 = arith.constant 0 : i32
    return %arg0, %c0_i32, %c0_i32_0 : i32, i32, i32
  }
}

</mosaic_0001>

<llo_original>
// kernel: tpu_custom_call.1
$region0: #{tpu_custom_call.1}
  #allocation0 [shape = 'u32[]', space=smem, size = 0x4, offset = 0x4, fixed_abs, tag = 'smem constant byte address 0x4 - core index']
  #allocation1 [shape = 'u32[72,128]{1,0:T(1,128)}', space=vmem, size = 0x9000, scoped, tag = 'internal scratch']
  %s0 = inlined_call_operand.vmem [shape: f32[20,128], index: 0, kind: input, shape index: {}]
  %s1 = inlined_call_operand.vmem [shape: s32[20,1], index: 1, kind: input, shape index: {}]
  %s2 = inlined_call_operand.hbm [shape: f32[3,8,128], index: 2, kind: output, shape index: {}]
  %s3 = sld [smem:[#allocation0]]
  $region41: #{tpu_custom_call.1} parent=0
    _
  %s5 = ssub.s32 1, %s3
  %s6 = scalar_select 0, %s5, %s3
  $region1: #{tpu_custom_call.1} parent=0
    #allocation2 [shape = 'u8[8192]{0}', space=vmem, size = 0x2000, scoped, tag = 'output window, operand 0']
    #allocation3 [shape = 's32[2]{0}', space=sflag, size = 0x8, scoped, tag = 'scoped memory for tpu_custom_call.1']
    %7 = vsyncpa [#allocation3], 0
    %s8 = scalar_lea.sflag [#allocation3], 1
    %9 = vsyncpa %s8, 0
    loop: start=0, step=1, limit=5
    $region2: #{tpu_custom_call.1} parent=1 // loop_pre_header
      _
    $region3: #{tpu_custom_call.1} parent=1 // loop_header
      %s11 = sphi 0, %s15
      %p12 = scmp.ge.s32.totalorder %s11, 5
      %s21 = sphi 0, %s23
      %s24 = sphi 0, %s21
      %s25 = sphi 0, %s24
      %s41 = sphi 0, %s25
      %s47 = sphi 0, %s49
      %s50 = sphi 0, %s47
      %s51 = sphi 0, %s50
      %s67 = sphi 0, %s51
      %s73 = sphi 0, %s75
      %s76 = sphi 0, %s73
      %s77 = sphi 0, %s76
      %s93 = sphi 0, %s77
    $region4: #{tpu_custom_call.1} parent=1 // loop_header_branch
      %14 = sbr.rel (%p12) target = $region8
    $region5: #{tpu_custom_call.1} parent=1 // loop_body
      %s16 = ssub.s32 %s11, 1
      %s17 = ssub.s32 %s11, 2
      %s18 = sadd.s32 %s11, 1
      %s19 = ssub.s32 %s11, %s18
      %p20 = scmp.eq.s32.totalorder %s19, 0
      %s22 = sadd.s32 %s21, 1
      %s23 = scalar_select %p20, %s21, %s22
      %p26 = pneg %p20
      %p27 = scmp.eq.s32.totalorder %s11, 2
      %p28 = por %p26, %p27
      %p29 = scmp.ne.s32.totalorder %s21, %s24
      %p30 = scmp.eq.s32.totalorder %s11, 0
      %p31 = por %p29, %p30
      %p32 = scmp.ne.s32.totalorder %s21, %s24
      %p33 = scmp.eq.s32.totalorder %s16, 2
      %p34 = por %p32, %p33
      %p35 = scmp.ne.s32.totalorder %s24, %s25
      %p36 = scmp.eq.s32.totalorder %s16, 0
      %p37 = por %p35, %p36
      %p38 = scmp.ne.s32.totalorder %s24, %s25
      %p39 = scmp.eq.s32.totalorder %s17, 2
      %p40 = por %p38, %p39
      %p42 = scmp.ne.s32.totalorder %s25, %s41
      %p43 = scmp.eq.s32.totalorder %s17, 0
      %p44 = por %p42, %p43
      %s45 = ssub.s32 %s11, %s18
      %p46 = scmp.eq.s32.totalorder %s45, 0
      %s48 = sadd.s32 %s47, 1
      %s49 = scalar_select %p46, %s47, %s48
      %p52 = pneg %p46
      %p53 = scmp.eq.s32.totalorder %s11, 2
      %p54 = por %p52, %p53
      %p55 = scmp.ne.s32.totalorder %s47, %s50
      %p56 = scmp.eq.s32.totalorder %s11, 0
      %p57 = por %p55, %p56
      %p58 = scmp.ne.s32.totalorder %s47, %s50
      %p59 = scmp.eq.s32.totalorder %s16, 2
      %p60 = por %p58, %p59
      %p61 = scmp.ne.s32.totalorder %s50, %s51
      %p62 = scmp.eq.s32.totalorder %s16, 0
      %p63 = por %p61, %p62
      %p64 = scmp.ne.s32.totalorder %s50, %s51
      %p65 = scmp.eq.s32.totalorder %s17, 2
      %p66 = por %p64, %p65
      %p68 = scmp.ne.s32.totalorder %s51, %s67
      %p69 = scmp.eq.s32.totalorder %s17, 0
      %p70 = por %p68, %p69
      %s71 = ssub.s32 %s11, %s18
      %p72 = scmp.eq.s32.totalorder %s71, 0
      %s74 = sadd.s32 %s73, 1
      %s75 = scalar_select %p72, %s73, %s74
      %p78 = pneg %p72
      %p79 = scmp.eq.s32.totalorder %s11, 2
      %p80 = por %p78, %p79
      %p81 = scmp.ne.s32.totalorder %s73, %s76
      %p82 = scmp.eq.s32.totalorder %s11, 0
      %p83 = por %p81, %p82
      %p84 = scmp.ne.s32.totalorder %s73, %s76
      %p85 = scmp.eq.s32.totalorder %s16, 2
      %p86 = por %p84, %p85
      %p87 = scmp.ne.s32.totalorder %s76, %s77
      %p88 = scmp.eq.s32.totalorder %s16, 0
      %p89 = por %p87, %p88
      %p90 = scmp.ne.s32.totalorder %s76, %s77
      %p91 = scmp.eq.s32.totalorder %s17, 2
      %p92 = por %p90, %p91
      %p94 = scmp.ne.s32.totalorder %s77, %s93
      %p95 = scmp.eq.s32.totalorder %s17, 0
      %p96 = por %p94, %p95
      %p97 = scmp.le.s32.totalorder 1, %s11
      %p98 = scmp.lt.s32.totalorder %s11, 4
      %p99 = pnand %p97, %p98
      %p100 = pneg %p99
      // Predicated region
      $region9: #{tpu_custom_call.1} parent=5 // pred_check
        _
      $region10: #{tpu_custom_call.1} parent=5 // pred_check_branch
        %102 = sbr.rel (%p99) target = $region12
      $region11: #{tpu_custom_call.1} parent=5 // pred_region
        %s103 = ssub.s32 %s11, 1
      $region12: #{tpu_custom_call.1} parent=5 // pred_fallthru
        _
      %p104 = scmp.lt.s32.totalorder %s11, 3
      // Predicated region
      $region13: #{tpu_custom_call.1} parent=5 // pred_check
        %p105 = pneg %p104
      $region14: #{tpu_custom_call.1} parent=5 // pred_check_branch
        %107 = sbr.rel (%p105) target = $region16
      $region15: #{tpu_custom_call.1} parent=5 // pred_region
        // Predicated region
        $region17: #{tpu_custom_call.1} parent=15 // pred_check
          %p108 = pneg %p31
        $region18: #{tpu_custom_call.1} parent=15 // pred_check_branch
          %110 = sbr.rel (%p108) target = $region20
        $region19: #{tpu_custom_call.1} parent=15 // pred_region
          %p111 = scmp.lt.s32.totalorder %s11, 2
          %s112 = scalar_select %p111, %s11, 2
          %s113 = smul.addr %s112, 8
          %s114 = scalar_lea.vmem %s0, %s113
        $region20: #{tpu_custom_call.1} parent=15 // pred_fallthru
          _
        // Predicated region
        $region21: #{tpu_custom_call.1} parent=15 // pred_check
          %p115 = pneg %p57
        $region22: #{tpu_custom_call.1} parent=15 // pred_check_branch
          %117 = sbr.rel (%p115) target = $region24
        $region23: #{tpu_custom_call.1} parent=15 // pred_region
          %p118 = scmp.lt.s32.totalorder %s11, 2
          %s119 = scalar_select %p118, %s11, 2
          %s120 = smul.addr %s119, 8
          %s121 = scalar_lea.vmem %s1, %s120
        $region24: #{tpu_custom_call.1} parent=15 // pred_fallthru
          _
      $region16: #{tpu_custom_call.1} parent=5 // pred_fallthru
        _
      %p122 = scmp.le.s32.totalorder 1, %s11
      %p123 = scmp.lt.s32.totalorder %s11, 4
      %p124 = pnand %p122, %p123
      %p125 = pneg %p124
      // Predicated region
      $region25: #{tpu_custom_call.1} parent=5 // pred_check
        _
      $region26: #{tpu_custom_call.1} parent=5 // pred_check_branch
        %127 = sbr.rel (%p124) target = $region28
      $region27: #{tpu_custom_call.1} parent=5 // pred_region
        %s128 = ssub.s32 %s11, 1
        %p129 = scmp.lt.s32.totalorder %s16, 2
        %s130 = scalar_select %p129, %s16, 2
        %s131 = smul.addr %s130, 8
        %s132 = scalar_lea.vmem %s0, %s131
        %p133 = pneg %p37
        %p134 = pneg %p34
        %p135 = scmp.lt.s32.totalorder %s16, 2
        %s136 = scalar_select %p135, %s16, 2
        %s137 = smul.addr %s136, 8
        %s138 = scalar_lea.vmem %s1, %s137
        %p139 = pneg %p63
        %p140 = pneg %p60
        %p141 = pneg %p89
        %p142 = pneg %p86
        %s143 = sand.u32 %s76, 1
        %s144 = scalar_lea.sflag [#allocation3], %s143
        %s145 = sand.u32 %s76, 1
        %s146 = smul.addr %s145, 8
        %s147 = scalar_lea.vmem [#allocation2], %s146
        %p148 = scmp.lt.s32.totalorder %s16, 2
        %s149 = scalar_select %p148, %s16, 2
        %s150 = smul.addr %s149, 8
        %s151 = scalar_lea.vmem %s0, %s150
        %p152 = scmp.lt.s32.totalorder %s16, 2
        %s153 = scalar_select %p152, %s16, 2
        %s154 = smul.addr %s153, 8
        %s155 = scalar_lea.vmem %s1, %s154
        %v156 = vld [vmem:[%s151] sm:$0xff]
        %157 = vmax.xlane.f32.xlu0 %v156
        %v158 = vpop.xlane.xlu0 %157
        %v159 = vsub.f32 %v156, %v158
        %v160 = vmul.f32 %v159, 1.442695
        %v161 = vpow.pop %v160
        %162 = vadd.xlane.f32.xlu0 %v161
        %v163 = vpop.xlane.xlu0 %162
        %v164 = vlog2.pop %v163
        %v165 = vmul.f32 %v164, 0.6931472
        %v166 = vld [vmem:[%s155] sm:$0xff]
        %v167 = vlaneseq
        %v168 = vand.u32 %v167, 127
        %169 = vset.pattern.permute.xlu0 0
        %170 = vperm.xlu0 %169, %v166
        %v171 = vpop.permute.xlu0 %170
        %vm172 = vcmp.eq.s32.totalorder %v168, %v171
        %v173 = vsel %vm172, %v159, 0.0
        %174 = vadd.xlane.f32.xlu0 %v173
        %v175 = vpop.xlane.xlu0 %174
        %176 = vadd.xlane.f32.xlu0 %v159
        %v177 = vpop.xlane.xlu0 %176
        %v178 = vmul.f32 %v175, 0.9
        %v179 = vsub.f32 %v165, %v178
        %v180 = vmul.f32 %v177, 0.00078125
        %v181 = vsub.f32 %v179, %v180
        %s182 = smul.u32 %s16, 8
        %v183 = vlaneseq
        %v184 = vshrl.u32 %v183, 7
        %v185 = vstv %s182
        %v186 = vadd.s32 %v185, %v184
        %vm187 = vcmp.lt.s32.totalorder %v186, 20
        %v188 = vsel %vm187, %v181, 0.0
        %vm189 = vcmask 7168
        %v190 = vsel %vm189, %v188, 0.0
        %191 = vadd.xlane.f32.xlu0 %v190
        %v192 = vpop.xlane.xlu0 %191
        %v193 = vrot.slane %v192, 4
        %v194 = vadd.f32 %v192, %v193
        %v195 = vrot.slane %v194, 2
        %v196 = vadd.f32 %v194, %v195
        %v197 = vrot.slane %v196, 1
        %v198 = vadd.f32 %v196, %v197
        %s199 = vtos %v198
        %v200 = vstv %s199
        %201 = vst [vmem:[%s147] sm:$0xff] %v200
        %s202 = sand.u32 %s76, 1
        %s203 = scalar_lea.sflag [#allocation3], %s202
        %s204 = sand.u32 %s76, 1
        %s205 = smul.addr %s204, 8
        %s206 = scalar_lea.vmem [#allocation2], %s205
        // Predicated region
        $region29: #{tpu_custom_call.1} parent=27 // pred_check
          %p207 = pneg %p86
        $region30: #{tpu_custom_call.1} parent=27 // pred_check_branch
          %209 = sbr.rel (%p207) target = $region32
        $region31: #{tpu_custom_call.1} parent=27 // pred_region
          %211 = vsyncadd %s203, 0
          %s212 = smul.addr %s16, 8
          %s213 = scalar_lea.hbm %s2, %s212
          %s215 = sshll.u32 %s206, 4
          %s216 = int_to_ptr.vmem [resolvable:$true] %s215
          %s217 = sshll.u32 %s213, 4
          %s218 = int_to_ptr.hbm [resolvable:$true] %s217
          %220 = dma.vmem_to_hbm [thread:$0]  %s216, 128, %s218, %s203
        $region32: #{tpu_custom_call.1} parent=27 // pred_fallthru
          _
      $region28: #{tpu_custom_call.1} parent=5 // pred_fallthru
        _
      %p221 = scmp.le.s32.totalorder 2, %s11
      // Predicated region
      $region33: #{tpu_custom_call.1} parent=5 // pred_check
        %p222 = pneg %p221
      $region34: #{tpu_custom_call.1} parent=5 // pred_check_branch
        %224 = sbr.rel (%p222) target = $region36
      $region35: #{tpu_custom_call.1} parent=5 // pred_region
        %s225 = ssub.s32 %s11, 2
        // Predicated region
        $region37: #{tpu_custom_call.1} parent=35 // pred_check
          %p226 = pneg %p92
        $region38: #{tpu_custom_call.1} parent=35 // pred_check_branch
          %228 = sbr.rel (%p226) target = $region40
        $region39: #{tpu_custom_call.1} parent=35 // pred_region
          %s229 = sand.u32 %s77, 1
          %s230 = scalar_lea.sflag [#allocation3], %s229
          %s231 = sand.u32 %s77, 1
          %s232 = smul.addr %s231, 8
          %s233 = scalar_lea.vmem [#allocation2], %s232
          %235 = dma.done %s230, 128
        $region40: #{tpu_custom_call.1} parent=35 // pred_fallthru
          _
      $region36: #{tpu_custom_call.1} parent=5 // pred_fallthru
        _
    $region6: #{tpu_custom_call.1} parent=1 // loop_footer
      %s15 = sadd.s32 1, %s11
    $region7: #{tpu_custom_call.1} parent=1 // loop_footer_branch
      %10 = sbr.rel target = $region3
    $region8: #{tpu_custom_call.1} parent=1 // loop_exit
      _
    %236 = vsyncpa [#allocation3], 1
    %s237 = scalar_lea.sflag [#allocation3], 1
    %238 = vsyncpa %s237, 1

</llo_original>
